<compile_context>
chip_gen: v5e
topology: v5e:2x2
jax: 0.10.0
libtpu: 0.0.40
codegen_flags: <defaults>
</compile_context>

<pallas_src>
import jax
import jax.numpy as jnp
from jax.experimental import pallas as pl
from jax.experimental.pallas import tpu as pltpu


def _band_toeplitz(ws, W, channel_major):
    """Scaled conv weights (KH, KW, Cin, Cout) -> band-Toeplitz matrix (KH*Cin*W, W*Cout).

    Row index is (ky, cin, w_in) when channel_major else (ky, w_in, cin); column index is
    (w_out, cout). Out-of-range taps (the width halo) are simply dropped, so the matmul
    implements "same" zero padding along W without materialising any padding.
    """
    KH, KW, Cin, Cout = ws.shape
    pw = (KW - 1) // 2
    u = jnp.arange(W)[:, None, None]        # input column
    k = jnp.arange(KW)[None, :, None]       # tap
    wq = jnp.arange(W)[None, None, :]       # output column
    ind = (u == (wq + k - pw)).astype(ws.dtype)                 # (W, KW, W)
    order = "yiuwo" if channel_major else "yuiwo"
    t = jnp.einsum(f"ukw,ykio->{order}", ind, ws)
    return t.reshape(KH * Cin * W, W * Cout).astype(jnp.float32)


def _make_kernel(B, C0, C1, H, W, KH, rpack):
    """Fused maxpool(2) + (conv3x3 + folded-BN + ReLU) x2 over one batch block."""
    Win = 2 * W            # input width
    WC1 = W * C1
    SEG1 = W               # conv1 K-segment width per (ky, cin)
    ph = (KH - 1) // 2

    def kernel(x_ref, p_ref, t1_ref, b1_ref, t2_ref, b2_ref, o_ref, lhs1_ref, lhs2_ref):
        # ---- 2x2 max pool, straight from the NCHW layout (no HBM transpose) ----------------
        # xr row (b, c, h) = [ input row 2h | input row 2h+1 ] of channel c  (2*Win lanes).
        xr = x_ref[...].reshape(B * C0 * H, 2 * Win)
        hmax = jnp.maximum(xr[:, :Win], xr[:, Win:])                    # height-pair max
        # p_ref is a (Win, Win) 0/1 gather matrix: lanes [0:W) <- even cols, [W:2W) <- odd cols.
        g = jnp.dot(hmax, p_ref[...], preferred_element_type=jnp.float32)
        pooled = jnp.maximum(g[:, :W], g[:, W:]).reshape(B, C0, H, W)   # width-pair max

        # ---- conv1 LHS (B, H, KH*C0*W): only the two H-halo rows are zeroed each step ------
        for ky in range(KH):
            d_lo, d_hi = max(0, ph - ky), min(H, H + ph - ky)
            r_lo, r_hi = d_lo + ky - ph, d_hi + ky - ph
            band = ky * C0 * SEG1
            if d_lo > 0:
                lhs1_ref[:, 0:d_lo, band:band + C0 * SEG1] = jnp.zeros(
                    (B, d_lo, C0 * SEG1), jnp.float32)
            if d_hi < H:
                lhs1_ref[:, d_hi:H, band:band + C0 * SEG1] = jnp.zeros(
                    (B, H - d_hi, C0 * SEG1), jnp.float32)
            for c in range(C0):
                col = band + c * SEG1
                lhs1_ref[:, d_lo:d_hi, col:col + SEG1] = pooled[:, c, r_lo:r_hi, :]

        # ---- conv1 + folded BN + ReLU: one MXU matmul, K = KH*C0*W --------------------------
        lhs1 = lhs1_ref[...].reshape(B * H, KH * C0 * SEG1)
        acc1 = jnp.dot(lhs1, t1_ref[...], preferred_element_type=jnp.float32)
        y1 = jnp.maximum(acc1 + b1_ref[...], 0.0)            # Dropout2d == identity in eval
        y13 = y1.reshape(B, H, WC1)

        # ---- conv2 LHS (B, H, KH*W*C1): lanes already in (w*C1 + ci) order ------------------
        for ky in range(KH):
            d_lo, d_hi = max(0, ph - ky), min(H, H + ph - ky)
            r_lo, r_hi = d_lo + ky - ph, d_hi + ky - ph
            band = ky * WC1
            if d_lo > 0:
                lhs2_ref[:, 0:d_lo, band:band + WC1] = jnp.zeros((B, d_lo, WC1), jnp.float32)
            if d_hi < H:
                lhs2_ref[:, d_hi:H, band:band + WC1] = jnp.zeros((B, H - d_hi, WC1), jnp.float32)
            lhs2_ref[:, d_lo:d_hi, band:band + WC1] = y13[:, r_lo:r_hi, :]

        # ---- conv2 + folded BN + ReLU: one MXU matmul, K = KH*W*C1 --------------------------
        lhs2 = lhs2_ref[...].reshape(B * H, KH * WC1)
        acc2 = jnp.dot(lhs2, t2_ref[...], preferred_element_type=jnp.float32)
        y2 = jnp.maximum(acc2 + b2_ref[...], 0.0)

        # ---- lane-dense output store: rpack spatial rows packed per stored row --------------
        if rpack == 2:
            y4 = y2.reshape(B, H // 2, 2, WC1)
            o_ref[:, :, 0:WC1] = y4[:, :, 0, :].astype(o_ref.dtype)
            o_ref[:, :, WC1:2 * WC1] = y4[:, :, 1, :].astype(o_ref.dtype)
        else:
            o_ref[...] = y2.reshape(B, H, WC1).astype(o_ref.dtype)

    return kernel


def downsampling_block_forward(x_nchw, params, eps=1e-5, batch_block=None):
    """DownsamplingBlock forward (eval mode). Input / output NCHW, like the PyTorch module."""
    x = x_nchw.astype(jnp.float32)
    N, C0, H_in, W_in = x.shape
    assert H_in % 2 == 0 and W_in % 2 == 0, "MaxPool2d(2) needs even spatial dims"
    H, W = H_in // 2, W_in // 2
    KH, KW, _, C1 = params["w0"].shape
    assert KH == 3 and KW == 3, "kernel assumes 3x3 convs with padding (1, 1)"

    # Fold the batch into the matmul M; target ~256 MXU rows per grid step.
    if batch_block is None:
        batch_block = min(N, max(1, 256 // H))
    while N % batch_block:
        batch_block -= 1
    grid = (N // batch_block,)

    # Fold BN (running stats) + conv bias into weights/bias; build band-Toeplitz matrices.
    sc0 = params["gamma0"] / jnp.sqrt(params["var0"] + eps)
    sh0 = params["beta0"] + (params["b0"] - params["mean0"]) * sc0
    sc1 = params["gamma1"] / jnp.sqrt(params["var1"] + eps)
    sh1 = params["beta1"] + (params["b1"] - params["mean1"]) * sc1
    t1 = _band_toeplitz(params["w0"].astype(jnp.float32) * sc0, W, channel_major=True)
    t2 = _band_toeplitz(params["w1"].astype(jnp.float32) * sc1, W, channel_major=False)
    bias1 = jnp.tile(sh0, W).reshape(1, W * C1).astype(jnp.float32)
    bias2 = jnp.tile(sh1, W).reshape(1, W * C1).astype(jnp.float32)

    # (W_in, W_in) 0/1 matrix splitting even/odd input columns into the two lane halves
    # (the 1-lane shift is done on the MXU, keeping the kernel to aligned slices only).
    ii = jnp.arange(W_in)[:, None]
    jj = jnp.arange(W_in)[None, :]
    psel = (((jj < W) & (ii == 2 * jj)) |
            ((jj >= W) & (ii == 2 * (jj - W) + 1))).astype(jnp.float32)

    # Free row-major reshape of the NCHW input: row (c*H + h) = two input rows of channel c.
    xr = x.reshape(N, C0 * H, 2 * W_in)

    K1 = KH * C0 * W
    K2 = KH * W * C1
    WC1 = W * C1
    rpack = 2 if H % 2 == 0 else 1
    Ho, Wo = H // rpack, rpack * WC1

    kernel = _make_kernel(batch_block, C0, C1, H, W, KH, rpack)

    out_pk = pl.pallas_call(
        kernel,
        out_shape=jax.ShapeDtypeStruct((N, Ho, Wo), jnp.float32),
        grid_spec=pltpu.PrefetchScalarGridSpec(
            num_scalar_prefetch=0,
            grid=grid,
            in_specs=[
                pl.BlockSpec((batch_block, C0 * H, 2 * W_in), lambda g: (g, 0, 0)),
                pl.BlockSpec((W_in, W_in), lambda g: (0, 0)),
                pl.BlockSpec((K1, WC1), lambda g: (0, 0)),
                pl.BlockSpec((1, WC1), lambda g: (0, 0)),
                pl.BlockSpec((K2, WC1), lambda g: (0, 0)),
                pl.BlockSpec((1, WC1), lambda g: (0, 0)),
            ],
            out_specs=pl.BlockSpec((batch_block, Ho, Wo), lambda g: (g, 0, 0)),
            scratch_shapes=[
                pltpu.VMEM((batch_block, H, K1), jnp.float32),   # conv1 banded LHS
                pltpu.VMEM((batch_block, H, K2), jnp.float32),   # conv2 banded LHS
            ],
        ),
        compiler_params=pltpu.CompilerParams(
            dimension_semantics=("parallel",)),
    )(xr, psel, t1, bias1, t2, bias2)

    out = out_pk.reshape(N, H, W, C1)        # free row-major un-pack of the 128-lane rows
    # NHWC -> NCHW so the module boundary matches the PyTorch DownsamplingBlock.
    # TODO(synk): drop this transpose (emit NHWC) once the surrounding model is NHWC end-to-end.
    return jnp.transpose(out, (0, 3, 1, 2))


def init_downsampling_block_params(key, in_channels, out_channels, kernel_size=(3, 3)):
    """Deterministic synthetic parameters mirroring the PyTorch module's shapes (HWIO weights)."""
    KH, KW = kernel_size
    keys = jax.random.split(key, 4)
    params = {}
    cins = (in_channels, out_channels)
    for i in range(2):
        cin = cins[i]
        params[f"w{i}"] = (jax.random.normal(keys[2 * i], (KH, KW, cin, out_channels),
                                             jnp.float32) * 0.1)
        params[f"b{i}"] = (jax.random.normal(keys[2 * i + 1], (out_channels,),
                                             jnp.float32) * 0.1)
        params[f"gamma{i}"] = jnp.ones((out_channels,), jnp.float32)
        params[f"beta{i}"] = jnp.zeros((out_channels,), jnp.float32)
        params[f"mean{i}"] = jnp.zeros((out_channels,), jnp.float32)
        params[f"var{i}"] = jnp.ones((out_channels,), jnp.float32)
    return params


def _reference_forward(x_nchw, params, eps=1e-5):
    """Pure-JAX reference (reduce_window + lax conv) for correctness checking."""
    x = jnp.transpose(x_nchw, (0, 2, 3, 1))
    x = jax.lax.reduce_window(x, -jnp.inf, jax.lax.max,
                              window_dimensions=(1, 2, 2, 1),
                              window_strides=(1, 2, 2, 1), padding="VALID")
    for i in range(2):
        w = params[f"w{i}"]
        y = jax.lax.conv_general_dilated(
            x, w, window_strides=(1, 1), padding="SAME",
            dimension_numbers=("NHWC", "HWIO", "NHWC"))
        y = y + params[f"b{i}"]
        scale = params[f"gamma{i}"] / jnp.sqrt(params[f"var{i}"] + eps)
        y = (y - params[f"mean{i}"]) * scale + params[f"beta{i}"]
        x = jnp.maximum(y, 0.0)
    return jnp.transpose(x, (0, 3, 1, 2))


if __name__ == "__main__":
    key = jax.random.PRNGKey(0)
    k_x, k_p = jax.random.split(key)

    N, C_in, H_in, W_in = 2, 4, 16, 16
    C_out = 8
    x = jax.random.normal(k_x, (N, C_in, H_in, W_in), jnp.float32)
    params = init_downsampling_block_params(k_p, C_in, C_out)

    out = downsampling_block_forward(x, params)
    out = jax.block_until_ready(out)

    ref = _reference_forward(x, params)
    assert out.shape == (N, C_out, H_in // 2, W_in // 2), out.shape
    assert float(jnp.max(jnp.abs(out - ref))) < 1e-3

    print("KERNEL_OK")
</pallas_src>

<mosaic_0001>
module attributes {stable_mosaic.version = 11 : i64} {
  func.func @kernel(%arg0: i32, %arg1: memref<2x32x32xf32, #tpu.memory_space<vmem>>, %arg2: memref<16x16xf32, #tpu.memory_space<vmem>>, %arg3: memref<96x64xf32, #tpu.memory_space<vmem>>, %arg4: memref<1x64xf32, #tpu.memory_space<vmem>>, %arg5: memref<192x64xf32, #tpu.memory_space<vmem>>, %arg6: memref<1x64xf32, #tpu.memory_space<vmem>>, %arg7: memref<2x4x128xf32, #tpu.memory_space<vmem>>, %arg8: memref<2x8x96xf32, #tpu.memory_space<vmem>>, %arg9: memref<2x8x192xf32, #tpu.memory_space<vmem>>) attributes {dimension_semantics = [#tpu.dimension_semantics<parallel>], iteration_bounds = array<i64: 1>, scalar_prefetch = 0 : i64, scratch_operands = 2 : i64, tpu.core_type = #tpu.core_type<tc>, window_params = [{transform_indices = @transform_0, window_bounds = array<i64: 2, 32, 32>}, {pipeline_mode = #tpu.pipeline_mode<synchronous>, transform_indices = @transform_1, window_bounds = array<i64: 16, 16>}, {pipeline_mode = #tpu.pipeline_mode<synchronous>, transform_indices = @transform_2, window_bounds = array<i64: 96, 64>}, {pipeline_mode = #tpu.pipeline_mode<synchronous>, transform_indices = @transform_3, window_bounds = array<i64: 1, 64>}, {pipeline_mode = #tpu.pipeline_mode<synchronous>, transform_indices = @transform_4, window_bounds = array<i64: 192, 64>}, {pipeline_mode = #tpu.pipeline_mode<synchronous>, transform_indices = @transform_5, window_bounds = array<i64: 1, 64>}, {transform_indices = @transform_6, window_bounds = array<i64: 2, 4, 128>}]} {
    %c0 = arith.constant 0 : index
    %c0_0 = arith.constant 0 : index
    %c0_1 = arith.constant 0 : index
    %0 = vector.load %arg1[%c0, %c0_0, %c0_1] : memref<2x32x32xf32, #tpu.memory_space<vmem>>, vector<2x32x32xf32>
    %1 = vector.shape_cast %0 : vector<2x32x32xf32> to vector<64x32xf32>
    %2 = vector.extract_strided_slice %1 {offsets = [0, 0], sizes = [64, 16], strides = [1, 1]} : vector<64x32xf32> to vector<64x16xf32>
    %3 = vector.extract_strided_slice %1 {offsets = [0, 16], sizes = [64, 16], strides = [1, 1]} : vector<64x32xf32> to vector<64x16xf32>
    %4 = arith.maximumf %2, %3 : vector<64x16xf32>
    %c0_2 = arith.constant 0 : index
    %c0_3 = arith.constant 0 : index
    %5 = vector.load %arg2[%c0_2, %c0_3] : memref<16x16xf32, #tpu.memory_space<vmem>>, vector<16x16xf32>
    %cst = arith.constant dense<0.000000e+00> : vector<64x16xf32>
    %6 = tpu.matmul %4, %5, %cst {dimension_numbers = #tpu.dot_dimension_numbers<[1], [0], [0], [1], [0, 0, 1, 1], [], []>} : vector<64x16xf32>, vector<16x16xf32>, vector<64x16xf32> -> vector<64x16xf32>
    %7 = vector.extract_strided_slice %6 {offsets = [0, 0], sizes = [64, 8], strides = [1, 1]} : vector<64x16xf32> to vector<64x8xf32>
    %8 = vector.extract_strided_slice %6 {offsets = [0, 8], sizes = [64, 8], strides = [1, 1]} : vector<64x16xf32> to vector<64x8xf32>
    %9 = arith.maximumf %7, %8 : vector<64x8xf32>
    %10 = vector.shape_cast %9 : vector<64x8xf32> to vector<2x4x8x8xf32>
    %cst_4 = arith.constant 0.000000e+00 : f32
    %11 = vector.broadcast %cst_4 : f32 to vector<2x1x32xf32>
    %c0_5 = arith.constant 0 : index
    %c0_6 = arith.constant 0 : index
    %c0_7 = arith.constant 0 : index
    %12 = vector.load %arg8[%c0_5, %c0_6, %c0_7] : memref<2x8x96xf32, #tpu.memory_space<vmem>>, vector<2x1x32xf32>
    tpu.vector_store %arg8[%c0_5, %c0_6, %c0_7], %11 {strides = array<i32>} : memref<2x8x96xf32, #tpu.memory_space<vmem>>, vector<2x1x32xf32>,
    %13 = vector.extract_strided_slice %10 {offsets = [0, 0, 0, 0], sizes = [2, 1, 7, 8], strides = [1, 1, 1, 1]} : vector<2x4x8x8xf32> to vector<2x1x7x8xf32>
    %14 = vector.shape_cast %13 : vector<2x1x7x8xf32> to vector<2x7x8xf32>
    %c0_8 = arith.constant 0 : index
    %c1 = arith.constant 1 : index
    %c0_9 = arith.constant 0 : index
    %15 = vector.load %arg8[%c0_8, %c1, %c0_9] : memref<2x8x96xf32, #tpu.memory_space<vmem>>, vector<2x7x8xf32>
    tpu.vector_store %arg8[%c0_8, %c1, %c0_9], %14 {strides = array<i32>} : memref<2x8x96xf32, #tpu.memory_space<vmem>>, vector<2x7x8xf32>,
    %16 = vector.extract_strided_slice %10 {offsets = [0, 1, 0, 0], sizes = [2, 1, 7, 8], strides = [1, 1, 1, 1]} : vector<2x4x8x8xf32> to vector<2x1x7x8xf32>
    %17 = vector.shape_cast %16 : vector<2x1x7x8xf32> to vector<2x7x8xf32>
    %c0_10 = arith.constant 0 : index
    %c1_11 = arith.constant 1 : index
    %c8 = arith.constant 8 : index
    %18 = vector.load %arg8[%c0_10, %c1_11, %c8] : memref<2x8x96xf32, #tpu.memory_space<vmem>>, vector<2x7x8xf32>
    tpu.vector_store %arg8[%c0_10, %c1_11, %c8], %17 {strides = array<i32>} : memref<2x8x96xf32, #tpu.memory_space<vmem>>, vector<2x7x8xf32>,
    %19 = vector.extract_strided_slice %10 {offsets = [0, 2, 0, 0], sizes = [2, 1, 7, 8], strides = [1, 1, 1, 1]} : vector<2x4x8x8xf32> to vector<2x1x7x8xf32>
    %20 = vector.shape_cast %19 : vector<2x1x7x8xf32> to vector<2x7x8xf32>
    %c0_12 = arith.constant 0 : index
    %c1_13 = arith.constant 1 : index
    %c16 = arith.constant 16 : index
    %21 = vector.load %arg8[%c0_12, %c1_13, %c16] : memref<2x8x96xf32, #tpu.memory_space<vmem>>, vector<2x7x8xf32>
    tpu.vector_store %arg8[%c0_12, %c1_13, %c16], %20 {strides = array<i32>} : memref<2x8x96xf32, #tpu.memory_space<vmem>>, vector<2x7x8xf32>,
    %22 = vector.extract_strided_slice %10 {offsets = [0, 3, 0, 0], sizes = [2, 1, 7, 8], strides = [1, 1, 1, 1]} : vector<2x4x8x8xf32> to vector<2x1x7x8xf32>
    %23 = vector.shape_cast %22 : vector<2x1x7x8xf32> to vector<2x7x8xf32>
    %c0_14 = arith.constant 0 : index
    %c1_15 = arith.constant 1 : index
    %c24 = arith.constant 24 : index
    %24 = vector.load %arg8[%c0_14, %c1_15, %c24] : memref<2x8x96xf32, #tpu.memory_space<vmem>>, vector<2x7x8xf32>
    tpu.vector_store %arg8[%c0_14, %c1_15, %c24], %23 {strides = array<i32>} : memref<2x8x96xf32, #tpu.memory_space<vmem>>, vector<2x7x8xf32>,
    %25 = vector.extract_strided_slice %10 {offsets = [0, 0, 0, 0], sizes = [2, 1, 8, 8], strides = [1, 1, 1, 1]} : vector<2x4x8x8xf32> to vector<2x1x8x8xf32>
    %26 = vector.shape_cast %25 : vector<2x1x8x8xf32> to vector<2x8x8xf32>
    %c0_16 = arith.constant 0 : index
    %c0_17 = arith.constant 0 : index
    %c32 = arith.constant 32 : index
    %27 = vector.load %arg8[%c0_16, %c0_17, %c32] : memref<2x8x96xf32, #tpu.memory_space<vmem>>, vector<2x8x8xf32>
    tpu.vector_store %arg8[%c0_16, %c0_17, %c32], %26 {strides = array<i32>} : memref<2x8x96xf32, #tpu.memory_space<vmem>>, vector<2x8x8xf32>,
    %28 = vector.extract_strided_slice %10 {offsets = [0, 1, 0, 0], sizes = [2, 1, 8, 8], strides = [1, 1, 1, 1]} : vector<2x4x8x8xf32> to vector<2x1x8x8xf32>
    %29 = vector.shape_cast %28 : vector<2x1x8x8xf32> to vector<2x8x8xf32>
    %c0_18 = arith.constant 0 : index
    %c0_19 = arith.constant 0 : index
    %c40 = arith.constant 40 : index
    %30 = vector.load %arg8[%c0_18, %c0_19, %c40] : memref<2x8x96xf32, #tpu.memory_space<vmem>>, vector<2x8x8xf32>
    tpu.vector_store %arg8[%c0_18, %c0_19, %c40], %29 {strides = array<i32>} : memref<2x8x96xf32, #tpu.memory_space<vmem>>, vector<2x8x8xf32>,
    %31 = vector.extract_strided_slice %10 {offsets = [0, 2, 0, 0], sizes = [2, 1, 8, 8], strides = [1, 1, 1, 1]} : vector<2x4x8x8xf32> to vector<2x1x8x8xf32>
    %32 = vector.shape_cast %31 : vector<2x1x8x8xf32> to vector<2x8x8xf32>
    %c0_20 = arith.constant 0 : index
    %c0_21 = arith.constant 0 : index
    %c48 = arith.constant 48 : index
    %33 = vector.load %arg8[%c0_20, %c0_21, %c48] : memref<2x8x96xf32, #tpu.memory_space<vmem>>, vector<2x8x8xf32>
    tpu.vector_store %arg8[%c0_20, %c0_21, %c48], %32 {strides = array<i32>} : memref<2x8x96xf32, #tpu.memory_space<vmem>>, vector<2x8x8xf32>,
    %34 = vector.extract_strided_slice %10 {offsets = [0, 3, 0, 0], sizes = [2, 1, 8, 8], strides = [1, 1, 1, 1]} : vector<2x4x8x8xf32> to vector<2x1x8x8xf32>
    %35 = vector.shape_cast %34 : vector<2x1x8x8xf32> to vector<2x8x8xf32>
    %c0_22 = arith.constant 0 : index
    %c0_23 = arith.constant 0 : index
    %c56 = arith.constant 56 : index
    %36 = vector.load %arg8[%c0_22, %c0_23, %c56] : memref<2x8x96xf32, #tpu.memory_space<vmem>>, vector<2x8x8xf32>
    tpu.vector_store %arg8[%c0_22, %c0_23, %c56], %35 {strides = array<i32>} : memref<2x8x96xf32, #tpu.memory_space<vmem>>, vector<2x8x8xf32>,
    %cst_24 = arith.constant 0.000000e+00 : f32
    %37 = vector.broadcast %cst_24 : f32 to vector<2x1x32xf32>
    %c0_25 = arith.constant 0 : index
    %c7 = arith.constant 7 : index
    %c64 = arith.constant 64 : index
    %38 = vector.load %arg8[%c0_25, %c7, %c64] : memref<2x8x96xf32, #tpu.memory_space<vmem>>, vector<2x1x32xf32>
    tpu.vector_store %arg8[%c0_25, %c7, %c64], %37 {strides = array<i32>} : memref<2x8x96xf32, #tpu.memory_space<vmem>>, vector<2x1x32xf32>,
    %39 = vector.extract_strided_slice %10 {offsets = [0, 0, 1, 0], sizes = [2, 1, 7, 8], strides = [1, 1, 1, 1]} : vector<2x4x8x8xf32> to vector<2x1x7x8xf32>
    %40 = vector.shape_cast %39 : vector<2x1x7x8xf32> to vector<2x7x8xf32>
    %c0_26 = arith.constant 0 : index
    %c0_27 = arith.constant 0 : index
    %c64_28 = arith.constant 64 : index
    %41 = vector.load %arg8[%c0_26, %c0_27, %c64_28] : memref<2x8x96xf32, #tpu.memory_space<vmem>>, vector<2x7x8xf32>
    tpu.vector_store %arg8[%c0_26, %c0_27, %c64_28], %40 {strides = array<i32>} : memref<2x8x96xf32, #tpu.memory_space<vmem>>, vector<2x7x8xf32>,
    %42 = vector.extract_strided_slice %10 {offsets = [0, 1, 1, 0], sizes = [2, 1, 7, 8], strides = [1, 1, 1, 1]} : vector<2x4x8x8xf32> to vector<2x1x7x8xf32>
    %43 = vector.shape_cast %42 : vector<2x1x7x8xf32> to vector<2x7x8xf32>
    %c0_29 = arith.constant 0 : index
    %c0_30 = arith.constant 0 : index
    %c72 = arith.constant 72 : index
    %44 = vector.load %arg8[%c0_29, %c0_30, %c72] : memref<2x8x96xf32, #tpu.memory_space<vmem>>, vector<2x7x8xf32>
    tpu.vector_store %arg8[%c0_29, %c0_30, %c72], %43 {strides = array<i32>} : memref<2x8x96xf32, #tpu.memory_space<vmem>>, vector<2x7x8xf32>,
    %45 = vector.extract_strided_slice %10 {offsets = [0, 2, 1, 0], sizes = [2, 1, 7, 8], strides = [1, 1, 1, 1]} : vector<2x4x8x8xf32> to vector<2x1x7x8xf32>
    %46 = vector.shape_cast %45 : vector<2x1x7x8xf32> to vector<2x7x8xf32>
    %c0_31 = arith.constant 0 : index
    %c0_32 = arith.constant 0 : index
    %c80 = arith.constant 80 : index
    %47 = vector.load %arg8[%c0_31, %c0_32, %c80] : memref<2x8x96xf32, #tpu.memory_space<vmem>>, vector<2x7x8xf32>
    tpu.vector_store %arg8[%c0_31, %c0_32, %c80], %46 {strides = array<i32>} : memref<2x8x96xf32, #tpu.memory_space<vmem>>, vector<2x7x8xf32>,
    %48 = vector.extract_strided_slice %10 {offsets = [0, 3, 1, 0], sizes = [2, 1, 7, 8], strides = [1, 1, 1, 1]} : vector<2x4x8x8xf32> to vector<2x1x7x8xf32>
    %49 = vector.shape_cast %48 : vector<2x1x7x8xf32> to vector<2x7x8xf32>
    %c0_33 = arith.constant 0 : index
    %c0_34 = arith.constant 0 : index
    %c88 = arith.constant 88 : index
    %50 = vector.load %arg8[%c0_33, %c0_34, %c88] : memref<2x8x96xf32, #tpu.memory_space<vmem>>, vector<2x7x8xf32>
    tpu.vector_store %arg8[%c0_33, %c0_34, %c88], %49 {strides = array<i32>} : memref<2x8x96xf32, #tpu.memory_space<vmem>>, vector<2x7x8xf32>,
    %c0_35 = arith.constant 0 : index
    %c0_36 = arith.constant 0 : index
    %c0_37 = arith.constant 0 : index
    %51 = vector.load %arg8[%c0_35, %c0_36, %c0_37] : memref<2x8x96xf32, #tpu.memory_space<vmem>>, vector<2x8x96xf32>
    %52 = vector.shape_cast %51 : vector<2x8x96xf32> to vector<16x96xf32>
    %c0_38 = arith.constant 0 : index
    %c0_39 = arith.constant 0 : index
    %53 = vector.load %arg3[%c0_38, %c0_39] : memref<96x64xf32, #tpu.memory_space<vmem>>, vector<96x64xf32>
    %cst_40 = arith.constant dense<0.000000e+00> : vector<16x64xf32>
    %54 = tpu.matmul %52, %53, %cst_40 {dimension_numbers = #tpu.dot_dimension_numbers<[1], [0], [0], [1], [0, 0, 1, 1], [], []>} : vector<16x96xf32>, vector<96x64xf32>, vector<16x64xf32> -> vector<16x64xf32>
    %c0_41 = arith.constant 0 : index
    %c0_42 = arith.constant 0 : index
    %55 = vector.load %arg4[%c0_41, %c0_42] : memref<1x64xf32, #tpu.memory_space<vmem>>, vector<1x64xf32>
    %56 = vector.broadcast %55 : vector<1x64xf32> to vector<16x64xf32>
    %57 = arith.addf %54, %56 : vector<16x64xf32>
    %cst_43 = arith.constant 0.000000e+00 : f32
    %58 = vector.broadcast %cst_43 : f32 to vector<16x64xf32>
    %59 = arith.maximumf %57, %58 : vector<16x64xf32>
    %60 = vector.shape_cast %59 : vector<16x64xf32> to vector<2x8x64xf32>
    %cst_44 = arith.constant 0.000000e+00 : f32
    %61 = vector.broadcast %cst_44 : f32 to vector<2x1x64xf32>
    %c0_45 = arith.constant 0 : index
    %c0_46 = arith.constant 0 : index
    %c0_47 = arith.constant 0 : index
    %62 = vector.load %arg9[%c0_45, %c0_46, %c0_47] : memref<2x8x192xf32, #tpu.memory_space<vmem>>, vector<2x1x64xf32>
    tpu.vector_store %arg9[%c0_45, %c0_46, %c0_47], %61 {strides = array<i32>} : memref<2x8x192xf32, #tpu.memory_space<vmem>>, vector<2x1x64xf32>,
    %63 = vector.extract_strided_slice %60 {offsets = [0, 0, 0], sizes = [2, 7, 64], strides = [1, 1, 1]} : vector<2x8x64xf32> to vector<2x7x64xf32>
    %c0_48 = arith.constant 0 : index
    %c1_49 = arith.constant 1 : index
    %c0_50 = arith.constant 0 : index
    %64 = vector.load %arg9[%c0_48, %c1_49, %c0_50] : memref<2x8x192xf32, #tpu.memory_space<vmem>>, vector<2x7x64xf32>
    tpu.vector_store %arg9[%c0_48, %c1_49, %c0_50], %63 {strides = array<i32>} : memref<2x8x192xf32, #tpu.memory_space<vmem>>, vector<2x7x64xf32>,
    %c0_51 = arith.constant 0 : index
    %c0_52 = arith.constant 0 : index
    %c64_53 = arith.constant 64 : index
    %65 = vector.load %arg9[%c0_51, %c0_52, %c64_53] : memref<2x8x192xf32, #tpu.memory_space<vmem>>, vector<2x8x64xf32>
    tpu.vector_store %arg9[%c0_51, %c0_52, %c64_53], %60 {strides = array<i32>} : memref<2x8x192xf32, #tpu.memory_space<vmem>>, vector<2x8x64xf32>,
    %cst_54 = arith.constant 0.000000e+00 : f32
    %66 = vector.broadcast %cst_54 : f32 to vector<2x1x64xf32>
    %c0_55 = arith.constant 0 : index
    %c7_56 = arith.constant 7 : index
    %c128 = arith.constant 128 : index
    %67 = vector.load %arg9[%c0_55, %c7_56, %c128] : memref<2x8x192xf32, #tpu.memory_space<vmem>>, vector<2x1x64xf32>
    tpu.vector_store %arg9[%c0_55, %c7_56, %c128], %66 {strides = array<i32>} : memref<2x8x192xf32, #tpu.memory_space<vmem>>, vector<2x1x64xf32>,
    %68 = vector.extract_strided_slice %60 {offsets = [0, 1, 0], sizes = [2, 7, 64], strides = [1, 1, 1]} : vector<2x8x64xf32> to vector<2x7x64xf32>
    %c0_57 = arith.constant 0 : index
    %c0_58 = arith.constant 0 : index
    %c128_59 = arith.constant 128 : index
    %69 = vector.load %arg9[%c0_57, %c0_58, %c128_59] : memref<2x8x192xf32, #tpu.memory_space<vmem>>, vector<2x7x64xf32>
    tpu.vector_store %arg9[%c0_57, %c0_58, %c128_59], %68 {strides = array<i32>} : memref<2x8x192xf32, #tpu.memory_space<vmem>>, vector<2x7x64xf32>,
    %c0_60 = arith.constant 0 : index
    %c0_61 = arith.constant 0 : index
    %c0_62 = arith.constant 0 : index
    %70 = vector.load %arg9[%c0_60, %c0_61, %c0_62] : memref<2x8x192xf32, #tpu.memory_space<vmem>>, vector<2x8x192xf32>
    %71 = vector.shape_cast %70 : vector<2x8x192xf32> to vector<16x192xf32>
    %c0_63 = arith.constant 0 : index
    %c0_64 = arith.constant 0 : index
    %72 = vector.load %arg5[%c0_63, %c0_64] : memref<192x64xf32, #tpu.memory_space<vmem>>, vector<192x64xf32>
    %cst_65 = arith.constant dense<0.000000e+00> : vector<16x64xf32>
    %73 = tpu.matmul %71, %72, %cst_65 {dimension_numbers = #tpu.dot_dimension_numbers<[1], [0], [0], [1], [0, 0, 1, 1], [], []>} : vector<16x192xf32>, vector<192x64xf32>, vector<16x64xf32> -> vector<16x64xf32>
    %c0_66 = arith.constant 0 : index
    %c0_67 = arith.constant 0 : index
    %74 = vector.load %arg6[%c0_66, %c0_67] : memref<1x64xf32, #tpu.memory_space<vmem>>, vector<1x64xf32>
    %75 = vector.broadcast %74 : vector<1x64xf32> to vector<16x64xf32>
    %76 = arith.addf %73, %75 : vector<16x64xf32>
    %cst_68 = arith.constant 0.000000e+00 : f32
    %77 = vector.broadcast %cst_68 : f32 to vector<16x64xf32>
    %78 = arith.maximumf %76, %77 : vector<16x64xf32>
    %79 = vector.shape_cast %78 : vector<16x64xf32> to vector<2x4x2x64xf32>
    %80 = vector.extract_strided_slice %79 {offsets = [0, 0, 0, 0], sizes = [2, 4, 1, 64], strides = [1, 1, 1, 1]} : vector<2x4x2x64xf32> to vector<2x4x1x64xf32>
    %81 = vector.shape_cast %80 : vector<2x4x1x64xf32> to vector<2x4x64xf32>
    %c0_69 = arith.constant 0 : index
    %c0_70 = arith.constant 0 : index
    %c0_71 = arith.constant 0 : index
    %82 = vector.load %arg7[%c0_69, %c0_70, %c0_71] : memref<2x4x128xf32, #tpu.memory_space<vmem>>, vector<2x4x64xf32>
    tpu.vector_store %arg7[%c0_69, %c0_70, %c0_71], %81 {strides = array<i32>} : memref<2x4x128xf32, #tpu.memory_space<vmem>>, vector<2x4x64xf32>,
    %83 = vector.extract_strided_slice %79 {offsets = [0, 0, 1, 0], sizes = [2, 4, 1, 64], strides = [1, 1, 1, 1]} : vector<2x4x2x64xf32> to vector<2x4x1x64xf32>
    %84 = vector.shape_cast %83 : vector<2x4x1x64xf32> to vector<2x4x64xf32>
    %c0_72 = arith.constant 0 : index
    %c0_73 = arith.constant 0 : index
    %c64_74 = arith.constant 64 : index
    %85 = vector.load %arg7[%c0_72, %c0_73, %c64_74] : memref<2x4x128xf32, #tpu.memory_space<vmem>>, vector<2x4x64xf32>
    tpu.vector_store %arg7[%c0_72, %c0_73, %c64_74], %84 {strides = array<i32>} : memref<2x4x128xf32, #tpu.memory_space<vmem>>, vector<2x4x64xf32>,
    return
  }
  func.func @transform_0(%arg0: i32) -> (i32, i32, i32) {
    %c0_i32 = arith.constant 0 : i32
    %c0_i32_0 = arith.constant 0 : i32
    %c0_i32_1 = arith.constant 0 : i32
    return %arg0, %c0_i32, %c0_i32_0 : i32, i32, i32
  }
  func.func @transform_1(%arg0: i32) -> (i32, i32) {
    %c0_i32 = arith.constant 0 : i32
    %c0_i32_0 = arith.constant 0 : i32
    %c0_i32_1 = arith.constant 0 : i32
    return %c0_i32, %c0_i32_0 : i32, i32
  }
  func.func @transform_2(%arg0: i32) -> (i32, i32) {
    %c0_i32 = arith.constant 0 : i32
    %c0_i32_0 = arith.constant 0 : i32
    %c0_i32_1 = arith.constant 0 : i32
    return %c0_i32, %c0_i32_0 : i32, i32
  }
  func.func @transform_3(%arg0: i32) -> (i32, i32) {
    %c0_i32 = arith.constant 0 : i32
    %c0_i32_0 = arith.constant 0 : i32
    %c0_i32_1 = arith.constant 0 : i32
    return %c0_i32, %c0_i32_0 : i32, i32
  }
  func.func @transform_4(%arg0: i32) -> (i32, i32) {
    %c0_i32 = arith.constant 0 : i32
    %c0_i32_0 = arith.constant 0 : i32
    %c0_i32_1 = arith.constant 0 : i32
    return %c0_i32, %c0_i32_0 : i32, i32
  }
  func.func @transform_5(%arg0: i32) -> (i32, i32) {
    %c0_i32 = arith.constant 0 : i32
    %c0_i32_0 = arith.constant 0 : i32
    %c0_i32_1 = arith.constant 0 : i32
    return %c0_i32, %c0_i32_0 : i32, i32
  }
  func.func @transform_6(%arg0: i32) -> (i32, i32, i32) {
    %c0_i32 = arith.constant 0 : i32
    %c0_i32_0 = arith.constant 0 : i32
    %c0_i32_1 = arith.constant 0 : i32
    return %arg0, %c0_i32, %c0_i32_0 : i32, i32, i32
  }
}

</mosaic_0001>

<llo_original>
// kernel: tpu_custom_call.1
$region0: #{tpu_custom_call.1}
  #allocation0 [shape = 'u32[]', space=smem, size = 0x4, offset = 0x4, fixed_abs, tag = 'smem constant byte address 0x4 - core index']
  #allocation1 [shape = 'u32[72,128]{1,0:T(1,128)}', space=vmem, size = 0x9000, scoped, tag = 'internal scratch']
  #allocation2 [shape = 'f32[2,8,96]{2,1,0:T(8,128)}', space=vmem, size = 0x2000, scoped, tag = 'scratch operand']
  #allocation3 [shape = 'f32[2,8,192]{2,1,0:T(8,128)}', space=vmem, size = 0x4000, scoped, tag = 'scratch operand']
  %s0 = inlined_call_operand.vmem [shape: f32[2,32,32], index: 0, kind: input, shape index: {}]
  %s1 = inlined_call_operand.vmem [shape: f32[16,16], index: 1, kind: input, shape index: {}]
  %s2 = inlined_call_operand.vmem [shape: f32[96,64], index: 2, kind: input, shape index: {}]
  %s3 = inlined_call_operand.vmem [shape: f32[1,64], index: 3, kind: input, shape index: {}]
  %s4 = inlined_call_operand.vmem [shape: f32[192,64], index: 4, kind: input, shape index: {}]
  %s5 = inlined_call_operand.vmem [shape: f32[1,64], index: 5, kind: input, shape index: {}]
  %s6 = inlined_call_operand.hbm [shape: f32[2,4,128], index: 6, kind: output, shape index: {}]
  %s7 = sld [smem:[#allocation0]]
  $region34: #{tpu_custom_call.1} parent=0
    _
  %s9 = ssub.s32 1, %s7
  %s10 = scalar_select 0, %s9, %s7
  $region1: #{tpu_custom_call.1} parent=0
    #allocation4 [shape = 'u8[4096]{0}', space=vmem, size = 0x1000, scoped, tag = 'output window, operand 0, single buffered']
    #allocation5 [shape = 's32[1]{0}', space=sflag, size = 0x4, scoped, tag = 'scoped memory for tpu_custom_call.1']
    %11 = vsyncpa [#allocation5], 0
    // Predicated region
    $region2: #{tpu_custom_call.1} parent=1 // pred_check
      _
    $region3: #{tpu_custom_call.1} parent=1 // pred_check_branch
      %13 = sbr.rel (0) target = $region5
    $region4: #{tpu_custom_call.1} parent=1 // pred_region
      _
    $region5: #{tpu_custom_call.1} parent=1 // pred_fallthru
      _
    // Predicated region
    $region6: #{tpu_custom_call.1} parent=1 // pred_check
      _
    $region7: #{tpu_custom_call.1} parent=1 // pred_check_branch
      %15 = sbr.rel (0) target = $region9
    $region8: #{tpu_custom_call.1} parent=1 // pred_region
      _
    $region9: #{tpu_custom_call.1} parent=1 // pred_fallthru
      _
    // Predicated region
    $region10: #{tpu_custom_call.1} parent=1 // pred_check
      _
    $region11: #{tpu_custom_call.1} parent=1 // pred_check_branch
      %17 = sbr.rel (0) target = $region13
    $region12: #{tpu_custom_call.1} parent=1 // pred_region
      _
    $region13: #{tpu_custom_call.1} parent=1 // pred_fallthru
      _
    // Predicated region
    $region14: #{tpu_custom_call.1} parent=1 // pred_check
      _
    $region15: #{tpu_custom_call.1} parent=1 // pred_check_branch
      %19 = sbr.rel (0) target = $region17
    $region16: #{tpu_custom_call.1} parent=1 // pred_region
      _
    $region17: #{tpu_custom_call.1} parent=1 // pred_fallthru
      _
    // Predicated region
    $region18: #{tpu_custom_call.1} parent=1 // pred_check
      _
    $region19: #{tpu_custom_call.1} parent=1 // pred_check_branch
      %21 = sbr.rel (0) target = $region21
    $region20: #{tpu_custom_call.1} parent=1 // pred_region
      _
    $region21: #{tpu_custom_call.1} parent=1 // pred_fallthru
      _
    // Predicated region
    $region22: #{tpu_custom_call.1} parent=1 // pred_check
      _
    $region23: #{tpu_custom_call.1} parent=1 // pred_check_branch
      %23 = sbr.rel (0) target = $region25
    $region24: #{tpu_custom_call.1} parent=1 // pred_region
      _
    $region25: #{tpu_custom_call.1} parent=1 // pred_fallthru
      _
    %v24 = vld [vmem:[%s0] sm:$0xff]
    %v25 = vld [vmem:[%s0 + $0x8] sm:$0xff]
    %v26 = vld [vmem:[%s0 + $0x10] sm:$0xff]
    %v27 = vld [vmem:[%s0 + $0x18] sm:$0xff]
    %v28 = vld [vmem:[%s0 + $0x20] sm:$0xff]
    %v29 = vld [vmem:[%s0 + $0x28] sm:$0xff]
    %v30 = vld [vmem:[%s0 + $0x30] sm:$0xff]
    %v31 = vld [vmem:[%s0 + $0x38] sm:$0xff]
    %40 = vrot.lane.b32.xlu0 %v24, 112
    %v41 = vpop.permute.xlu0 %40
    %42 = vrot.lane.b32.xlu0 %v25, 112
    %v43 = vpop.permute.xlu0 %42
    %44 = vrot.lane.b32.xlu0 %v26, 112
    %v45 = vpop.permute.xlu0 %44
    %46 = vrot.lane.b32.xlu0 %v27, 112
    %v47 = vpop.permute.xlu0 %46
    %48 = vrot.lane.b32.xlu0 %v28, 112
    %v49 = vpop.permute.xlu0 %48
    %50 = vrot.lane.b32.xlu0 %v29, 112
    %v51 = vpop.permute.xlu0 %50
    %52 = vrot.lane.b32.xlu0 %v30, 112
    %v53 = vpop.permute.xlu0 %52
    %54 = vrot.lane.b32.xlu0 %v31, 112
    %v55 = vpop.permute.xlu0 %54
    %v64 = vmax.f32 %v24, %v41
    %v65 = vmax.f32 %v25, %v43
    %v66 = vmax.f32 %v26, %v45
    %v67 = vmax.f32 %v27, %v47
    %v68 = vmax.f32 %v28, %v49
    %v69 = vmax.f32 %v29, %v51
    %v70 = vmax.f32 %v30, %v53
    %v71 = vmax.f32 %v31, %v55
    %v72 = vld [vmem:[%s1] sm:$0xff]
    %v73 = vld [vmem:[%s1 + $0x8] sm:$0xff]
    %vm74 = vcmask 130048
    %v76 = vsel %vm74, %v64, 0
    %v79 = vsel %vm74, %v65, 0
    %v82 = vsel %vm74, %v66, 0
    %v85 = vsel %vm74, %v67, 0
    %v88 = vsel %vm74, %v68, 0
    %v91 = vsel %vm74, %v69, 0
    %v94 = vsel %vm74, %v70, 0
    %v97 = vsel %vm74, %v71, 0
    %99 = vmatpush.msra.mxu0 0.0
    %100 = vmatpush.msra.mxu0 0.0
    %101 = vmatpush.msra.mxu0 0.0
    %102 = vmatpush.msra.mxu0 0.0
    %103 = vmatpush.msra.mxu0 0.0
    %104 = vmatpush.msra.mxu0 0.0
    %105 = vmatpush.msra.mxu0 0.0
    %106 = vmatpush.msra.mxu0 0.0
    %107 = vmatpush.msra.mxu0 0.0
    %108 = vmatpush.msra.mxu0 0.0
    %109 = vmatpush.msra.mxu0 0.0
    %110 = vmatpush.msra.mxu0 0.0
    %111 = vmatpush.msra.mxu0 0.0
    %112 = vmatpush.msra.mxu0 0.0
    %113 = vmatpush.msra.mxu0 %v73
    %114 = vmatpush.msra.mxu0 %v72
    %115 = vmatmul.f32.gmra.mxu0 %v76
    %v116 = vpop.f32.mrf.mxu0
    %v117 = vadd.f32 0.0, %v116
    %118 = vmatmul.f32.gmra.mxu0 %v79
    %v119 = vpop.f32.mrf.mxu0
    %v120 = vadd.f32 0.0, %v119
    %121 = vmatmul.f32.gmra.mxu0 %v82
    %v122 = vpop.f32.mrf.mxu0
    %v123 = vadd.f32 0.0, %v122
    %124 = vmatmul.f32.gmra.mxu0 %v85
    %v125 = vpop.f32.mrf.mxu0
    %v126 = vadd.f32 0.0, %v125
    %127 = vmatmul.f32.gmra.mxu0 %v88
    %v128 = vpop.f32.mrf.mxu0
    %v129 = vadd.f32 0.0, %v128
    %130 = vmatmul.f32.gmra.mxu0 %v91
    %v131 = vpop.f32.mrf.mxu0
    %v132 = vadd.f32 0.0, %v131
    %133 = vmatmul.f32.gmra.mxu0 %v94
    %v134 = vpop.f32.mrf.mxu0
    %v135 = vadd.f32 0.0, %v134
    %136 = vmatmul.f32.gmra.mxu0 %v97
    %v137 = vpop.f32.mrf.mxu0
    %v138 = vadd.f32 0.0, %v137
    %139 = vdwg.mxu0
    %148 = vrot.lane.b32.xlu0 %v117, 120
    %v149 = vpop.permute.xlu0 %148
    %150 = vrot.lane.b32.xlu0 %v120, 120
    %v151 = vpop.permute.xlu0 %150
    %152 = vrot.lane.b32.xlu0 %v123, 120
    %v153 = vpop.permute.xlu0 %152
    %154 = vrot.lane.b32.xlu0 %v126, 120
    %v155 = vpop.permute.xlu0 %154
    %156 = vrot.lane.b32.xlu0 %v129, 120
    %v157 = vpop.permute.xlu0 %156
    %158 = vrot.lane.b32.xlu0 %v132, 120
    %v159 = vpop.permute.xlu0 %158
    %160 = vrot.lane.b32.xlu0 %v135, 120
    %v161 = vpop.permute.xlu0 %160
    %162 = vrot.lane.b32.xlu0 %v138, 120
    %v163 = vpop.permute.xlu0 %162
    %v172 = vmax.f32 %v117, %v149
    %v173 = vmax.f32 %v120, %v151
    %v174 = vmax.f32 %v123, %v153
    %v175 = vmax.f32 %v126, %v155
    %v176 = vmax.f32 %v129, %v157
    %v177 = vmax.f32 %v132, %v159
    %v178 = vmax.f32 %v135, %v161
    %v179 = vmax.f32 %v138, %v163
    %vm180 = vcmask 253952
    %181 = vst.msk [vmem:[#allocation2] sm:$0x1] %vm180, 0.0
    %182 = vst.msk [vmem:[#allocation2 + $0x8] sm:$0x1] %vm180, 0.0
    %vm183 = vcmask 63488
    %184 = vst.msk [vmem:[#allocation2 + $0x1] sm:$0x7f] %vm183, %v172
    %185 = vst.msk [vmem:[#allocation2 + $0x9] sm:$0x7f] %vm183, %v176
    %188 = vrot.lane.b32.xlu0 %v173, 8
    %v189 = vpop.permute.xlu0 %188
    %190 = vrot.lane.b32.xlu0 %v177, 8
    %v191 = vpop.permute.xlu0 %190
    %vm194 = vcmask 129088
    %195 = vst.msk [vmem:[#allocation2 + $0x1] sm:$0x7f] %vm194, %v189
    %196 = vst.msk [vmem:[#allocation2 + $0x9] sm:$0x7f] %vm194, %v191
    %199 = vrot.lane.b32.xlu0 %v174, 16
    %v200 = vpop.permute.xlu0 %199
    %201 = vrot.lane.b32.xlu0 %v178, 16
    %v202 = vpop.permute.xlu0 %201
    %vm205 = vcmask 194688
    %206 = vst.msk [vmem:[#allocation2 + $0x1] sm:$0x7f] %vm205, %v200
    %207 = vst.msk [vmem:[#allocation2 + $0x9] sm:$0x7f] %vm205, %v202
    %210 = vrot.lane.b32.xlu0 %v175, 24
    %v211 = vpop.permute.xlu0 %210
    %212 = vrot.lane.b32.xlu0 %v179, 24
    %v213 = vpop.permute.xlu0 %212
    %vm216 = vcmask 260288
    %217 = vst.msk [vmem:[#allocation2 + $0x1] sm:$0x7f] %vm216, %v211
    %218 = vst.msk [vmem:[#allocation2 + $0x9] sm:$0x7f] %vm216, %v213
    %221 = vrot.lane.b32.xlu0 %v172, 32
    %v222 = vpop.permute.xlu0 %221
    %223 = vrot.lane.b32.xlu0 %v176, 32
    %v224 = vpop.permute.xlu0 %223
    %vm227 = vcmask 326912
    %228 = vst.msk [vmem:[#allocation2] sm:$0xff] %vm227, %v222
    %229 = vst.msk [vmem:[#allocation2 + $0x8] sm:$0xff] %vm227, %v224
    %230 = vrot.lane.b32.xlu0 %v173, 40
    %v231 = vpop.permute.xlu0 %230
    %232 = vrot.lane.b32.xlu0 %v177, 40
    %v233 = vpop.permute.xlu0 %232
    %vm236 = vcmask 392512
    %237 = vst.msk [vmem:[#allocation2] sm:$0xff] %vm236, %v231
    %238 = vst.msk [vmem:[#allocation2 + $0x8] sm:$0xff] %vm236, %v233
    %239 = vrot.lane.b32.xlu0 %v174, 48
    %v240 = vpop.permute.xlu0 %239
    %241 = vrot.lane.b32.xlu0 %v178, 48
    %v242 = vpop.permute.xlu0 %241
    %vm245 = vcmask 458112
    %246 = vst.msk [vmem:[#allocation2] sm:$0xff] %vm245, %v240
    %247 = vst.msk [vmem:[#allocation2 + $0x8] sm:$0xff] %vm245, %v242
    %248 = vrot.lane.b32.xlu0 %v175, 56
    %v249 = vpop.permute.xlu0 %248
    %250 = vrot.lane.b32.xlu0 %v179, 56
    %v251 = vpop.permute.xlu0 %250
    %vm254 = vcmask 523712
    %255 = vst.msk [vmem:[#allocation2] sm:$0xff] %vm254, %v249
    %256 = vst.msk [vmem:[#allocation2 + $0x8] sm:$0xff] %vm254, %v251
    %vm257 = vcmask 778752
    %258 = vst.msk [vmem:[#allocation2 + $0x7] sm:$0x1] %vm257, 0.0
    %259 = vst.msk [vmem:[#allocation2 + $0xf] sm:$0x1] %vm257, 0.0
    %260 = vrot.lane.b32.xlu0 %v172, 64
    %v261 = vpop.permute.xlu0 %260
    %262 = vrot.lane.b32.xlu0 %v176, 64
    %v263 = vpop.permute.xlu0 %262
    %vm266 = vcmask 589313
    %267 = vst.msk [vmem:[#allocation2 - $0x1] sm:$0xfe] %vm266, %v261
    %268 = vst.msk [vmem:[#allocation2 + $0x7] sm:$0xfe] %vm266, %v263
    %269 = vrot.lane.b32.xlu0 %v173, 72
    %v270 = vpop.permute.xlu0 %269
    %271 = vrot.lane.b32.xlu0 %v177, 72
    %v272 = vpop.permute.xlu0 %271
    %vm275 = vcmask 654913
    %276 = vst.msk [vmem:[#allocation2 - $0x1] sm:$0xfe] %vm275, %v270
    %277 = vst.msk [vmem:[#allocation2 + $0x7] sm:$0xfe] %vm275, %v272
    %278 = vrot.lane.b32.xlu0 %v174, 80
    %v279 = vpop.permute.xlu0 %278
    %280 = vrot.lane.b32.xlu0 %v178, 80
    %v281 = vpop.permute.xlu0 %280
    %vm284 = vcmask 720513
    %285 = vst.msk [vmem:[#allocation2 - $0x1] sm:$0xfe] %vm284, %v279
    %286 = vst.msk [vmem:[#allocation2 + $0x7] sm:$0xfe] %vm284, %v281
    %287 = vrot.lane.b32.xlu0 %v175, 88
    %v288 = vpop.permute.xlu0 %287
    %289 = vrot.lane.b32.xlu0 %v179, 88
    %v290 = vpop.permute.xlu0 %289
    %vm293 = vcmask 786113
    %294 = vst.msk [vmem:[#allocation2 - $0x1] sm:$0xfe] %vm293, %v288
    %295 = vst.msk [vmem:[#allocation2 + $0x7] sm:$0xfe] %vm293, %v290
    %v296 = vld [vmem:[#allocation2] sm:$0xff]
    %v297 = vld [vmem:[#allocation2 + $0x8] sm:$0xff]
    %v298 = vld [vmem:[%s2] sm:$0xff]
    %v299 = vld [vmem:[%s2 + $0x8] sm:$0xff]
    %v300 = vld [vmem:[%s2 + $0x10] sm:$0xff]
    %v301 = vld [vmem:[%s2 + $0x18] sm:$0xff]
    %v302 = vld [vmem:[%s2 + $0x20] sm:$0xff]
    %v303 = vld [vmem:[%s2 + $0x28] sm:$0xff]
    %v304 = vld [vmem:[%s2 + $0x30] sm:$0xff]
    %v305 = vld [vmem:[%s2 + $0x38] sm:$0xff]
    %v306 = vld [vmem:[%s2 + $0x40] sm:$0xff]
    %v307 = vld [vmem:[%s2 + $0x48] sm:$0xff]
    %v308 = vld [vmem:[%s2 + $0x50] sm:$0xff]
    %v309 = vld [vmem:[%s2 + $0x58] sm:$0xff]
    %v310 = vld [vmem:[%s3] sm:$0x1]
    %v312 = vperm.slane %v310, 0
    %vm314 = vcmask 785408
    %v316 = vsel %vm314, %v296, 0
    %v319 = vsel %vm314, %v297, 0
    %321 = vmatpush.msra.mxu0 0.0
    %322 = vmatpush.msra.mxu0 0.0
    %323 = vmatpush.msra.mxu0 0.0
    %324 = vmatpush.msra.mxu0 0.0
    %325 = vmatpush.msra.mxu0 %v309
    %326 = vmatpush.msra.mxu0 %v308
    %327 = vmatpush.msra.mxu0 %v307
    %328 = vmatpush.msra.mxu0 %v306
    %329 = vmatpush.msra.mxu0 %v305
    %330 = vmatpush.msra.mxu0 %v304
    %331 = vmatpush.msra.mxu0 %v303
    %332 = vmatpush.msra.mxu0 %v302
    %333 = vmatpush.msra.mxu0 %v301
    %334 = vmatpush.msra.mxu0 %v300
    %335 = vmatpush.msra.mxu0 %v299
    %336 = vmatpush.msra.mxu0 %v298
    %337 = vmatmul.f32.gmra.mxu0 %v316
    %v338 = vpop.f32.mrf.mxu0
    %v339 = vadd.f32 %v312, %v338
    %340 = vmatmul.f32.gmra.mxu0 %v319
    %v341 = vpop.f32.mrf.mxu0
    %v342 = vadd.f32 %v312, %v341
    %343 = vdwg.mxu0
    %v344 = vmax.f32 %v339, 0.0
    %v345 = vmax.f32 %v342, 0.0
    %vm346 = vcmask 516096
    %347 = vst.msk [vmem:[#allocation3] sm:$0x1] %vm346, 0.0
    %348 = vst.msk [vmem:[#allocation3 + $0x10] sm:$0x1] %vm346, 0.0
    %v351 = vrot.slane %v344, 7
    %v352 = vrot.slane %v345, 7
    %vm355 = vcmask 523265
    %356 = vst.msk [vmem:[#allocation3] sm:$0xfe] %vm355, %v351
    %357 = vst.msk [vmem:[#allocation3 + $0x10] sm:$0xfe] %vm355, %v352
    %358 = vrot.lane.b32.xlu0 %v344, 64
    %v359 = vpop.permute.xlu0 %358
    %360 = vrot.lane.b32.xlu0 %v345, 64
    %v361 = vpop.permute.xlu0 %360
    %vm364 = vcmask 1048064
    %365 = vst.msk [vmem:[#allocation3] sm:$0xff] %vm364, %v359
    %366 = vst.msk [vmem:[#allocation3 + $0x10] sm:$0xff] %vm364, %v361
    %367 = vst.msk [vmem:[#allocation3 + $0xf] sm:$0x1] %vm346, 0.0
    %368 = vst.msk [vmem:[#allocation3 + $0x1f] sm:$0x1] %vm346, 0.0
    %v369 = vrot.slane %v344, 1
    %v370 = vrot.slane %v345, 1
    %vm373 = vcmask 522240
    %374 = vst.msk [vmem:[#allocation3 + $0x8] sm:$0x7f] %vm373, %v369
    %375 = vst.msk [vmem:[#allocation3 + $0x18] sm:$0x7f] %vm373, %v370
    %v376 = vld [vmem:[#allocation3] sm:$0xff]
    %v377 = vld [vmem:[#allocation3 + $0x8] sm:$0xff]
    %v378 = vld [vmem:[#allocation3 + $0x10] sm:$0xff]
    %v379 = vld [vmem:[#allocation3 + $0x18] sm:$0xff]
    %v380 = vld [vmem:[%s4] sm:$0xff]
    %v381 = vld [vmem:[%s4 + $0x8] sm:$0xff]
    %v382 = vld [vmem:[%s4 + $0x10] sm:$0xff]
    %v383 = vld [vmem:[%s4 + $0x18] sm:$0xff]
    %v384 = vld [vmem:[%s4 + $0x20] sm:$0xff]
    %v385 = vld [vmem:[%s4 + $0x28] sm:$0xff]
    %v386 = vld [vmem:[%s4 + $0x30] sm:$0xff]
    %v387 = vld [vmem:[%s4 + $0x38] sm:$0xff]
    %v388 = vld [vmem:[%s4 + $0x40] sm:$0xff]
    %v389 = vld [vmem:[%s4 + $0x48] sm:$0xff]
    %v390 = vld [vmem:[%s4 + $0x50] sm:$0xff]
    %v391 = vld [vmem:[%s4 + $0x58] sm:$0xff]
    %v392 = vld [vmem:[%s4 + $0x60] sm:$0xff]
    %v393 = vld [vmem:[%s4 + $0x68] sm:$0xff]
    %v394 = vld [vmem:[%s4 + $0x70] sm:$0xff]
    %v395 = vld [vmem:[%s4 + $0x78] sm:$0xff]
    %v396 = vld [vmem:[%s4 + $0x80] sm:$0xff]
    %v397 = vld [vmem:[%s4 + $0x88] sm:$0xff]
    %v398 = vld [vmem:[%s4 + $0x90] sm:$0xff]
    %v399 = vld [vmem:[%s4 + $0x98] sm:$0xff]
    %v400 = vld [vmem:[%s4 + $0xa0] sm:$0xff]
    %v401 = vld [vmem:[%s4 + $0xa8] sm:$0xff]
    %v402 = vld [vmem:[%s4 + $0xb0] sm:$0xff]
    %v403 = vld [vmem:[%s4 + $0xb8] sm:$0xff]
    %v404 = vld [vmem:[%s5] sm:$0x1]
    %v406 = vperm.slane %v404, 0
    %vm408 = vcmask 523264
    %v410 = vsel %vm408, %v377, 0
    %v413 = vsel %vm408, %v379, 0
    %415 = vmatpush.msra.mxu0 %v395
    %416 = vmatpush.msra.mxu0 %v394
    %417 = vmatpush.msra.mxu0 %v393
    %418 = vmatpush.msra.mxu0 %v392
    %419 = vmatpush.msra.mxu0 %v391
    %420 = vmatpush.msra.mxu0 %v390
    %421 = vmatpush.msra.mxu0 %v389
    %422 = vmatpush.msra.mxu0 %v388
    %423 = vmatpush.msra.mxu0 %v387
    %424 = vmatpush.msra.mxu0 %v386
    %425 = vmatpush.msra.mxu0 %v385
    %426 = vmatpush.msra.mxu0 %v384
    %427 = vmatpush.msra.mxu0 %v383
    %428 = vmatpush.msra.mxu0 %v382
    %429 = vmatpush.msra.mxu0 %v381
    %430 = vmatpush.msra.mxu0 %v380
    %431 = vmatmul.f32.gmra.mxu0 %v376
    %v432 = vpop.f32.mrf.mxu0
    %v433 = vadd.f32 %v406, %v432
    %434 = vmatmul.f32.gmra.mxu0 %v378
    %v435 = vpop.f32.mrf.mxu0
    %v436 = vadd.f32 %v406, %v435
    %437 = vdwg.mxu0
    %438 = vmatpush.msra.mxu0 0.0
    %439 = vmatpush.msra.mxu0 0.0
    %440 = vmatpush.msra.mxu0 0.0
    %441 = vmatpush.msra.mxu0 0.0
    %442 = vmatpush.msra.mxu0 0.0
    %443 = vmatpush.msra.mxu0 0.0
    %444 = vmatpush.msra.mxu0 0.0
    %445 = vmatpush.msra.mxu0 0.0
    %446 = vmatpush.msra.mxu0 %v403
    %447 = vmatpush.msra.mxu0 %v402
    %448 = vmatpush.msra.mxu0 %v401
    %449 = vmatpush.msra.mxu0 %v400
    %450 = vmatpush.msra.mxu0 %v399
    %451 = vmatpush.msra.mxu0 %v398
    %452 = vmatpush.msra.mxu0 %v397
    %453 = vmatpush.msra.mxu0 %v396
    %454 = vmatmul.f32.gmra.mxu0 %v410
    %v455 = vpop.f32.mrf.mxu0
    %v456 = vadd.f32 %v433, %v455
    %457 = vmatmul.f32.gmra.mxu0 %v413
    %v458 = vpop.f32.mrf.mxu0
    %v459 = vadd.f32 %v436, %v458
    %460 = vdwg.mxu0
    %v461 = vmax.f32 %v456, 0.0
    %v462 = vmax.f32 %v459, 0.0
    %v465 = vrot.slane %v461, 2
    %v466 = vrot.slane %v461, 4
    %v467 = vrot.slane %v461, 6
    %v468 = vrot.slane %v462, 2
    %v469 = vrot.slane %v462, 4
    %v470 = vrot.slane %v462, 6
    %v471 = vperm.slane %v461, 0
    %v472 = vperm.slane %v465, 0
    %v473 = vperm.slane %v466, 0
    %v474 = vperm.slane %v467, 0
    %v475 = vperm.slane %v462, 0
    %v476 = vperm.slane %v468, 0
    %v477 = vperm.slane %v469, 0
    %v478 = vperm.slane %v470, 0
    %vm479 = vcmask 1041409
    %v480 = vsel %vm479, %v472, %v471
    %vm481 = vcmask 1042434
    %v482 = vsel %vm481, %v473, %v480
    %vm483 = vcmask 1043459
    %v484 = vsel %vm483, %v474, %v482
    %v485 = vsel %vm479, %v476, %v475
    %v486 = vsel %vm481, %v477, %v485
    %v487 = vsel %vm483, %v478, %v486
    %vm490 = vcmask 519168
    %491 = vst.msk [vmem:[#allocation4] sm:$0xf] %vm490, %v484
    %492 = vst.msk [vmem:[#allocation4 + $0x4] sm:$0xf] %vm490, %v487
    %v493 = vperm.slane %v461, 1
    %v494 = vperm.slane %v465, 1
    %v495 = vperm.slane %v466, 1
    %v496 = vperm.slane %v467, 1
    %v497 = vperm.slane %v462, 1
    %v498 = vperm.slane %v468, 1
    %v499 = vperm.slane %v469, 1
    %v500 = vperm.slane %v470, 1
    %v501 = vsel %vm481, %v494, %v493
    %v502 = vsel %vm483, %v495, %v501
    %vm503 = vcmask 1044484
    %v504 = vsel %vm503, %v496, %v502
    %v505 = vsel %vm481, %v498, %v497
    %v506 = vsel %vm483, %v499, %v505
    %v507 = vsel %vm503, %v500, %v506
    %508 = vrot.lane.b32.xlu0 %v504, 64
    %v509 = vpop.permute.xlu0 %508
    %510 = vrot.lane.b32.xlu0 %v507, 64
    %v511 = vpop.permute.xlu0 %510
    %vm514 = vcmask 1044993
    %515 = vst.msk [vmem:[#allocation4 - $0x1] sm:$0x1e] %vm514, %v509
    %516 = vst.msk [vmem:[#allocation4 + $0x3] sm:$0x1e] %vm514, %v511
    // Predicated region
    $region26: #{tpu_custom_call.1} parent=1 // pred_check
      _
    $region27: #{tpu_custom_call.1} parent=1 // pred_check_branch
      %518 = sbr.rel (0) target = $region29
    $region28: #{tpu_custom_call.1} parent=1 // pred_region
      %520 = vsyncadd [#allocation5], 0
      %s521 = sshll.u32 [#allocation4], 4
      %s522 = int_to_ptr.vmem [resolvable:$true] %s521
      %s523 = sshll.u32 %s6, 4
      %s524 = int_to_ptr.hbm [resolvable:$true] %s523
      %529 = dma.vmem_to_hbm [thread:$0]  %s522, 128, %s524, [#allocation5], 64, 64, 4
    $region29: #{tpu_custom_call.1} parent=1 // pred_fallthru
      _
    // Predicated region
    $region30: #{tpu_custom_call.1} parent=1 // pred_check
      _
    $region31: #{tpu_custom_call.1} parent=1 // pred_check_branch
      %531 = sbr.rel (0) target = $region33
    $region32: #{tpu_custom_call.1} parent=1 // pred_region
      %533 = dma.done [#allocation5], 128
    $region33: #{tpu_custom_call.1} parent=1 // pred_fallthru
      _
    %534 = vsyncpa [#allocation5], 1

</llo_original>
